<compile_context>
chip_gen: v7x
topology: tpu7x:2x2x1
jax: 0.10.0
libtpu: 0.0.40
codegen_flags: <defaults>
</compile_context>

<pallas_src>
import math
import functools

import jax
import jax.numpy as jnp
from jax import lax
from jax.experimental import pallas as pl
from jax.experimental.pallas import tpu as pltpu


def _embeddings_kernel(time_ref, type_ref, table_ref, const_ref, out_ref, *, scale):
    # time_ref : (1, tS, 1)  f32     type_ref : (1, tS, 1)  i32
    # table_ref: (T, Dp)     f32     const_ref: (2, Dp)     f32  (row0 = 1/pos_vec, row1 = phase)
    # out_ref  : (1, tS, Dp) f32
    time_col = time_ref[0]                         # (tS, 1)
    ids_col = type_ref[0]                          # (tS, 1)
    tS = time_col.shape[0]
    T = table_ref.shape[0]

    # ---- type embedding: gather via one-hot matmul on the MXU; sqrt(d_model) folded into one-hot.
    type_iota = lax.broadcasted_iota(jnp.int32, (tS, T), 1)
    onehot = jnp.where(ids_col == type_iota, jnp.float32(scale), jnp.float32(0.0))   # (tS, T)
    out_ref[0] = jnp.dot(onehot, table_ref[...], preferred_element_type=jnp.float32)  # (tS, Dp)

    # ---- sinusoidal time embedding: one sin per element, masked where time == 0.
    inv_pos = const_ref[0:1, :]                    # (1, Dp)
    phase = const_ref[1:2, :]                      # (1, Dp)
    angle = time_col * inv_pos + phase             # (tS, Dp)
    mask = (time_col != 0.0).astype(jnp.float32)   # (tS, 1)
    out_ref[0] = out_ref[0] + jnp.sin(angle) * mask


def embeddings_pallas(time_tensor, type_tensor, emb_table, d_model):
    """time_tensor: [B, S] f32, type_tensor: [B, S] int, emb_table: [num_types, d_model] f32."""
    B, S = time_tensor.shape
    T, D = emb_table.shape
    assert D == d_model

    # Pad d_model to a lane-dense multiple of 128 (padded lanes compute exact zeros, sliced off below).
    Dp = max(128, ((D + 127) // 128) * 128)

    # Sequence tile: multiple of 8, sized so one output block is <= ~4 MiB.
    S8 = ((S + 7) // 8) * 8
    max_ts = max(8, min(1024, ((1 << 20) // Dp) // 8 * 8))
    tS = min(S8, max_ts)
    Sp = ((S8 + tS - 1) // tS) * tS
    n_s = Sp // tS

    # ---- constant glue computed once in plain JAX ----
    i = jnp.arange(D)
    pos_vec = jnp.power(jnp.float32(10000.0),
                        2.0 * (i // 2).astype(jnp.float32) / jnp.float32(D))
    inv_pos = jnp.zeros((Dp,), jnp.float32).at[:D].set(1.0 / pos_vec)
    phase = jnp.zeros((Dp,), jnp.float32).at[:D].set(
        jnp.where(i % 2 == 0, 0.0, math.pi / 2.0).astype(jnp.float32))
    const = jnp.stack([inv_pos, phase], axis=0)                       # (2, Dp)

    table_p = jnp.zeros((T, Dp), jnp.float32).at[:, :D].set(emb_table.astype(jnp.float32))
    time_p = jnp.zeros((B, Sp, 1), jnp.float32).at[:, :S, 0].set(time_tensor.astype(jnp.float32))
    type_p = jnp.zeros((B, Sp, 1), jnp.int32).at[:, :S, 0].set(type_tensor.astype(jnp.int32))

    # Conservative VMEM budget: in/out double-buffers + resident table + intermediate headroom.
    # TODO(synk): for very large vocabularies (T*Dp*4 >> a few MiB) switch to a scalar-prefetch
    #             row-gather of the table instead of keeping it resident + one-hot matmul.
    vmem_est = (2 * 2 * tS * 4 * 2          # time + type, double-buffered
                + 2 * T * Dp * 4            # table (counted double-buffered to be safe)
                + 2 * 2 * Dp * 4            # consts
                + 2 * tS * Dp * 4           # output double-buffer
                + 6 * tS * Dp * 4)          # intermediates headroom
    vmem_limit = int(min(48 * 1024 * 1024, max(24 * 1024 * 1024, vmem_est * 2)))

    kernel = functools.partial(_embeddings_kernel, scale=math.sqrt(d_model))

    out = pl.pallas_call(
        kernel,
        out_shape=jax.ShapeDtypeStruct((B, Sp, Dp), jnp.float32),
        grid_spec=pltpu.PrefetchScalarGridSpec(
            num_scalar_prefetch=0,
            grid=(B, n_s),
            in_specs=[
                pl.BlockSpec((1, tS, 1), lambda b, s: (b, s, 0)),   # time
                pl.BlockSpec((1, tS, 1), lambda b, s: (b, s, 0)),   # type ids
                pl.BlockSpec((T, Dp), lambda b, s: (0, 0)),         # embedding table (resident)
                pl.BlockSpec((2, Dp), lambda b, s: (0, 0)),         # [1/pos_vec ; phase]
            ],
            out_specs=pl.BlockSpec((1, tS, Dp), lambda b, s: (b, s, 0)),
        ),
        compiler_params=pltpu.CompilerParams(
            dimension_semantics=("parallel", "parallel"),
            vmem_limit_bytes=vmem_limit),
    )(time_p, type_p, table_p, const)

    return out[:, :S, :D]


def embeddings_forward(src, emb_table, d_model):
    """Mirrors Embeddings.forward: src = (time_tensor, type_tensor[, extra])."""
    time_tensor, type_tensor = src[0], src[1]
    out = embeddings_pallas(time_tensor, type_tensor, emb_table, d_model)
    if len(src) == 3:
        return (out, src[2])
    return out


def _reference(time_tensor, type_tensor, emb_table, d_model):
    D = d_model
    i = jnp.arange(D)
    pos_vec = jnp.power(jnp.float32(10000.0),
                        2.0 * (i // 2).astype(jnp.float32) / jnp.float32(D))
    type_emb = emb_table[type_tensor.astype(jnp.int32)] * math.sqrt(D)
    angle = time_tensor.astype(jnp.float32)[..., None] / pos_vec[None, None, :]
    time_emb = jnp.where(i % 2 == 0, jnp.sin(angle), jnp.cos(angle))
    mask = (time_tensor != 0.0).astype(jnp.float32)[..., None]
    return type_emb + time_emb * mask


if __name__ == "__main__":
    B, S = 2, 8
    d_model = 32
    num_types = 6

    key = jax.random.PRNGKey(0)
    k_tab, k_time, k_type = jax.random.split(key, 3)

    # nn.Embedding default init ~ N(0,1); padding_idx=0 -> row 0 zeroed.
    emb_table = jax.random.normal(k_tab, (num_types, d_model), dtype=jnp.float32)
    emb_table = emb_table.at[0].set(0.0)

    # Time tensor with some zeros (padding positions), type ids in [0, num_types).
    time_tensor = jax.random.uniform(k_time, (B, S), dtype=jnp.float32, minval=0.0, maxval=5.0)
    time_tensor = time_tensor.at[:, -2:].set(0.0)  # force a few padded slots
    type_tensor = jax.random.randint(k_type, (B, S), 0, num_types, dtype=jnp.int32)

    src = (time_tensor, type_tensor)
    out = embeddings_forward(src, emb_table, d_model)
    out = jax.block_until_ready(out)

    ref = _reference(time_tensor, type_tensor, emb_table, d_model)
    assert out.shape == (B, S, d_model)
    assert jnp.allclose(out, ref, atol=1e-5, rtol=1e-5), "mismatch vs reference"

    print("KERNEL_OK")
</pallas_src>

<mosaic_0001>
module attributes {stable_mosaic.version = 11 : i64} {
  func.func @_embeddings_kernel(%arg0: i32, %arg1: i32, %arg2: memref<1x8x1xf32, #tpu.memory_space<vmem>>, %arg3: memref<1x8x1xi32, #tpu.memory_space<vmem>>, %arg4: memref<6x128xf32, #tpu.memory_space<vmem>>, %arg5: memref<2x128xf32, #tpu.memory_space<vmem>>, %arg6: memref<1x8x128xf32, #tpu.memory_space<vmem>>) attributes {dimension_semantics = [#tpu.dimension_semantics<parallel>, #tpu.dimension_semantics<parallel>], iteration_bounds = array<i64: 2, 1>, scalar_prefetch = 0 : i64, scratch_operands = 0 : i64, tpu.core_type = #tpu.core_type<tc>, window_params = [{transform_indices = @transform_0, window_bounds = array<i64: 1, 8, 1>}, {transform_indices = @transform_1, window_bounds = array<i64: 1, 8, 1>}, {pipeline_mode = #tpu.pipeline_mode<synchronous>, transform_indices = @transform_2, window_bounds = array<i64: 6, 128>}, {pipeline_mode = #tpu.pipeline_mode<synchronous>, transform_indices = @transform_3, window_bounds = array<i64: 2, 128>}, {transform_indices = @transform_4, window_bounds = array<i64: 1, 8, 128>}]} {
    %c0 = arith.constant 0 : index
    %c0_0 = arith.constant 0 : index
    %c0_1 = arith.constant 0 : index
    %0 = vector.load %arg2[%c0, %c0_0, %c0_1] : memref<1x8x1xf32, #tpu.memory_space<vmem>>, vector<1x8x1xf32>
    %1 = vector.shape_cast %0 : vector<1x8x1xf32> to vector<8x1xf32>
    %c0_2 = arith.constant 0 : index
    %c0_3 = arith.constant 0 : index
    %c0_4 = arith.constant 0 : index
    %2 = vector.load %arg3[%c0_2, %c0_3, %c0_4] : memref<1x8x1xi32, #tpu.memory_space<vmem>>, vector<1x8x1xi32>
    %3 = vector.shape_cast %2 : vector<1x8x1xi32> to vector<8x1xi32>
    %4 = tpu.iota {dimensions = array<i32: 1>} : vector<8x6xi32>
    %5 = vector.broadcast %3 : vector<8x1xi32> to vector<8x6xi32>
    %6 = arith.cmpi eq, %5, %4 : vector<8x6xi32>
    %cst = arith.constant 5.65685415 : f32
    %cst_5 = arith.constant 0.000000e+00 : f32
    %7 = vector.broadcast %cst : f32 to vector<8x6xf32>
    %8 = vector.broadcast %cst_5 : f32 to vector<8x6xf32>
    %9 = arith.select %6, %7, %8 : vector<8x6xi1>, vector<8x6xf32>
    %c0_6 = arith.constant 0 : index
    %c0_7 = arith.constant 0 : index
    %10 = vector.load %arg4[%c0_6, %c0_7] : memref<6x128xf32, #tpu.memory_space<vmem>>, vector<6x128xf32>
    %cst_8 = arith.constant dense<0.000000e+00> : vector<8x128xf32>
    %11 = tpu.matmul %9, %10, %cst_8 {dimension_numbers = #tpu.dot_dimension_numbers<[1], [0], [0], [1], [0, 0, 1, 1], [], []>} : vector<8x6xf32>, vector<6x128xf32>, vector<8x128xf32> -> vector<8x128xf32>
    %c0_9 = arith.constant 0 : index
    %c0_10 = arith.constant 0 : index
    %c0_11 = arith.constant 0 : index
    %12 = vector.load %arg6[%c0_9, %c0_10, %c0_11] : memref<1x8x128xf32, #tpu.memory_space<vmem>>, vector<1x8x128xf32>
    %13 = vector.shape_cast %12 : vector<1x8x128xf32> to vector<8x128xf32>
    %14 = vector.shape_cast %11 : vector<8x128xf32> to vector<1x8x128xf32>
    tpu.vector_store %arg6[%c0_9, %c0_10, %c0_11], %14 {strides = array<i32>} : memref<1x8x128xf32, #tpu.memory_space<vmem>>, vector<1x8x128xf32>,
    %c0_12 = arith.constant 0 : index
    %c0_13 = arith.constant 0 : index
    %15 = vector.load %arg5[%c0_12, %c0_13] : memref<2x128xf32, #tpu.memory_space<vmem>>, vector<1x128xf32>
    %c1 = arith.constant 1 : index
    %c0_14 = arith.constant 0 : index
    %16 = vector.load %arg5[%c1, %c0_14] : memref<2x128xf32, #tpu.memory_space<vmem>>, vector<1x128xf32>
    %17 = vector.broadcast %1 : vector<8x1xf32> to vector<8x128xf32>
    %18 = vector.broadcast %15 : vector<1x128xf32> to vector<8x128xf32>
    %19 = arith.mulf %17, %18 : vector<8x128xf32>
    %20 = vector.broadcast %16 : vector<1x128xf32> to vector<8x128xf32>
    %21 = arith.addf %19, %20 : vector<8x128xf32>
    %cst_15 = arith.constant 0.000000e+00 : f32
    %22 = vector.broadcast %cst_15 : f32 to vector<8x1xf32>
    %23 = arith.cmpf one, %1, %22 : vector<8x1xf32>
    %24 = arith.extui %23 : vector<8x1xi1> to vector<8x1xi32>
    %25 = arith.sitofp %24 : vector<8x1xi32> to vector<8x1xf32>
    %c0_16 = arith.constant 0 : index
    %c0_17 = arith.constant 0 : index
    %c0_18 = arith.constant 0 : index
    %26 = vector.load %arg6[%c0_16, %c0_17, %c0_18] : memref<1x8x128xf32, #tpu.memory_space<vmem>>, vector<1x8x128xf32>
    %27 = vector.shape_cast %26 : vector<1x8x128xf32> to vector<8x128xf32>
    %28 = math.sin %21 : vector<8x128xf32>
    %29 = vector.broadcast %25 : vector<8x1xf32> to vector<8x128xf32>
    %30 = arith.mulf %28, %29 : vector<8x128xf32>
    %31 = arith.addf %27, %30 : vector<8x128xf32>
    %c0_19 = arith.constant 0 : index
    %c0_20 = arith.constant 0 : index
    %c0_21 = arith.constant 0 : index
    %32 = vector.load %arg6[%c0_19, %c0_20, %c0_21] : memref<1x8x128xf32, #tpu.memory_space<vmem>>, vector<1x8x128xf32>
    %33 = vector.shape_cast %32 : vector<1x8x128xf32> to vector<8x128xf32>
    %34 = vector.shape_cast %31 : vector<8x128xf32> to vector<1x8x128xf32>
    tpu.vector_store %arg6[%c0_19, %c0_20, %c0_21], %34 {strides = array<i32>} : memref<1x8x128xf32, #tpu.memory_space<vmem>>, vector<1x8x128xf32>,
    return
  }
  func.func @transform_0(%arg0: i32, %arg1: i32) -> (i32, i32, i32) {
    %c0_i32 = arith.constant 0 : i32
    %c0_i32_0 = arith.constant 0 : i32
    return %arg0, %arg1, %c0_i32 : i32, i32, i32
  }
  func.func @transform_1(%arg0: i32, %arg1: i32) -> (i32, i32, i32) {
    %c0_i32 = arith.constant 0 : i32
    %c0_i32_0 = arith.constant 0 : i32
    return %arg0, %arg1, %c0_i32 : i32, i32, i32
  }
  func.func @transform_2(%arg0: i32, %arg1: i32) -> (i32, i32) {
    %c0_i32 = arith.constant 0 : i32
    %c0_i32_0 = arith.constant 0 : i32
    %c0_i32_1 = arith.constant 0 : i32
    return %c0_i32, %c0_i32_0 : i32, i32
  }
  func.func @transform_3(%arg0: i32, %arg1: i32) -> (i32, i32) {
    %c0_i32 = arith.constant 0 : i32
    %c0_i32_0 = arith.constant 0 : i32
    %c0_i32_1 = arith.constant 0 : i32
    return %c0_i32, %c0_i32_0 : i32, i32
  }
  func.func @transform_4(%arg0: i32, %arg1: i32) -> (i32, i32, i32) {
    %c0_i32 = arith.constant 0 : i32
    %c0_i32_0 = arith.constant 0 : i32
    return %arg0, %arg1, %c0_i32 : i32, i32, i32
  }
}

</mosaic_0001>

<llo_original>
// kernel: tpu_custom_call.1
$region0: #{tpu_custom_call.1}
  #allocation0 [shape = 'u32[]', space=smem, size = 0x4, offset = 0x4, fixed_abs, tag = 'smem constant byte address 0x4 - core index']
  #allocation1 [shape = 'u32[144,128]{1,0:T(1,128)}', space=vmem, size = 0x12000, scoped, tag = 'internal scratch']
  %s0 = inlined_call_operand.vmem [shape: f32[2,8,1], index: 0, kind: input, shape index: {}]
  %s1 = inlined_call_operand.vmem [shape: s32[2,8,1], index: 1, kind: input, shape index: {}]
  %s2 = inlined_call_operand.vmem [shape: f32[6,128], index: 2, kind: input, shape index: {}]
  %s3 = inlined_call_operand.vmem [shape: f32[2,128], index: 3, kind: input, shape index: {}]
  %s4 = inlined_call_operand.hbm [shape: f32[2,8,128], index: 4, kind: output, shape index: {}]
  %s5 = sld [smem:[#allocation0]]
  $region49: #{tpu_custom_call.1} parent=0
    _
  %s7 = ssub.s32 1, %s5
  %s8 = scalar_select 0, %s7, %s5
  $region1: #{tpu_custom_call.1} parent=0
    #allocation2 [shape = 'u8[8192]{0}', space=vmem, size = 0x2000, scoped, tag = 'output window, operand 0']
    #allocation3 [shape = 's32[2]{0}', space=sflag, size = 0x8, scoped, tag = 'scoped memory for tpu_custom_call.1']
    %9 = vsyncpa [#allocation3], 0
    %s10 = scalar_lea.sflag [#allocation3], 1
    %11 = vsyncpa %s10, 0
    loop: start=0, step=1, limit=4
    $region2: #{tpu_custom_call.1} parent=1 // loop_pre_header
      _
    $region3: #{tpu_custom_call.1} parent=1 // loop_header
      %s13 = sphi 0, %s17
      %p14 = scmp.ge.s32.totalorder %s13, 4
      %s20 = sphi 0, %s32
      %s21 = sphi 0, %s28
      %s22 = sphi 0, %s20
      %s23 = sphi 0, %s21
      %s24 = sphi 0, %s22
      %s25 = sphi 0, %s23
      %s37 = sphi 0, %s39
      %s40 = sphi 0, %s37
      %s41 = sphi 0, %s40
      %s57 = sphi 0, %s41
      %s65 = sphi 0, %s67
      %s68 = sphi 0, %s65
      %s69 = sphi 0, %s68
      %s85 = sphi 0, %s69
      %s89 = sphi 0, %s89
      %s91 = sphi 0, %s89
      %s92 = sphi 0, %s91
      %s106 = sphi 0, %s92
      %s110 = sphi 0, %s110
      %s112 = sphi 0, %s110
      %s113 = sphi 0, %s112
      %s127 = sphi 0, %s113
      %s135 = sphi 0, %s137
      %s138 = sphi 0, %s135
      %s139 = sphi 0, %s138
      %s155 = sphi 0, %s139
    $region4: #{tpu_custom_call.1} parent=1 // loop_header_branch
      %16 = sbr.rel (%p14) target = $region8
    $region5: #{tpu_custom_call.1} parent=1 // loop_body
      %s18 = ssub.s32 %s13, 1
      %s19 = ssub.s32 %s13, 2
      %s26 = sadd.s32 1, %s21
      %p27 = scmp.ge.s32.totalorder %s26, 1
      %s28 = scalar_select %p27, 0, %s26
      %s29 = sadd.s32 1, %s20
      %s30 = scalar_select %p27, %s29, %s20
      %p31 = scmp.ge.s32.totalorder %s30, 2
      %s32 = scalar_select %p31, 0, %s30
      %s33 = ssub.s32 %s20, %s32
      %s34 = ssub.s32 %s21, %s28
      %s35 = sor.u32 %s33, %s34
      %p36 = scmp.eq.s32.totalorder %s35, 0
      %s38 = sadd.s32 %s37, 1
      %s39 = scalar_select %p36, %s37, %s38
      %p42 = pneg %p36
      %p43 = scmp.eq.s32.totalorder %s13, 1
      %p44 = por %p42, %p43
      %p45 = scmp.ne.s32.totalorder %s37, %s40
      %p46 = scmp.eq.s32.totalorder %s13, 0
      %p47 = por %p45, %p46
      %p48 = scmp.ne.s32.totalorder %s37, %s40
      %p49 = scmp.eq.s32.totalorder %s18, 1
      %p50 = por %p48, %p49
      %p51 = scmp.ne.s32.totalorder %s40, %s41
      %p52 = scmp.eq.s32.totalorder %s18, 0
      %p53 = por %p51, %p52
      %p54 = scmp.ne.s32.totalorder %s40, %s41
      %p55 = scmp.eq.s32.totalorder %s19, 1
      %p56 = por %p54, %p55
      %p58 = scmp.ne.s32.totalorder %s41, %s57
      %p59 = scmp.eq.s32.totalorder %s19, 0
      %p60 = por %p58, %p59
      %s61 = ssub.s32 %s20, %s32
      %s62 = ssub.s32 %s21, %s28
      %s63 = sor.u32 %s61, %s62
      %p64 = scmp.eq.s32.totalorder %s63, 0
      %s66 = sadd.s32 %s65, 1
      %s67 = scalar_select %p64, %s65, %s66
      %p70 = pneg %p64
      %p71 = scmp.eq.s32.totalorder %s13, 1
      %p72 = por %p70, %p71
      %p73 = scmp.ne.s32.totalorder %s65, %s68
      %p74 = scmp.eq.s32.totalorder %s13, 0
      %p75 = por %p73, %p74
      %p76 = scmp.ne.s32.totalorder %s65, %s68
      %p77 = scmp.eq.s32.totalorder %s18, 1
      %p78 = por %p76, %p77
      %p79 = scmp.ne.s32.totalorder %s68, %s69
      %p80 = scmp.eq.s32.totalorder %s18, 0
      %p81 = por %p79, %p80
      %p82 = scmp.ne.s32.totalorder %s68, %s69
      %p83 = scmp.eq.s32.totalorder %s19, 1
      %p84 = por %p82, %p83
      %p86 = scmp.ne.s32.totalorder %s69, %s85
      %p87 = scmp.eq.s32.totalorder %s19, 0
      %p88 = por %p86, %p87
      %s90 = sadd.s32 %s89, 1
      %p93 = scmp.eq.s32.totalorder %s13, 1
      %p94 = scmp.ne.s32.totalorder %s89, %s91
      %p95 = scmp.eq.s32.totalorder %s13, 0
      %p96 = por %p94, %p95
      %p97 = scmp.ne.s32.totalorder %s89, %s91
      %p98 = scmp.eq.s32.totalorder %s18, 1
      %p99 = por %p97, %p98
      %p100 = scmp.ne.s32.totalorder %s91, %s92
      %p101 = scmp.eq.s32.totalorder %s18, 0
      %p102 = por %p100, %p101
      %p103 = scmp.ne.s32.totalorder %s91, %s92
      %p104 = scmp.eq.s32.totalorder %s19, 1
      %p105 = por %p103, %p104
      %p107 = scmp.ne.s32.totalorder %s92, %s106
      %p108 = scmp.eq.s32.totalorder %s19, 0
      %p109 = por %p107, %p108
      %s111 = sadd.s32 %s110, 1
      %p114 = scmp.eq.s32.totalorder %s13, 1
      %p115 = scmp.ne.s32.totalorder %s110, %s112
      %p116 = scmp.eq.s32.totalorder %s13, 0
      %p117 = por %p115, %p116
      %p118 = scmp.ne.s32.totalorder %s110, %s112
      %p119 = scmp.eq.s32.totalorder %s18, 1
      %p120 = por %p118, %p119
      %p121 = scmp.ne.s32.totalorder %s112, %s113
      %p122 = scmp.eq.s32.totalorder %s18, 0
      %p123 = por %p121, %p122
      %p124 = scmp.ne.s32.totalorder %s112, %s113
      %p125 = scmp.eq.s32.totalorder %s19, 1
      %p126 = por %p124, %p125
      %p128 = scmp.ne.s32.totalorder %s113, %s127
      %p129 = scmp.eq.s32.totalorder %s19, 0
      %p130 = por %p128, %p129
      %s131 = ssub.s32 %s20, %s32
      %s132 = ssub.s32 %s21, %s28
      %s133 = sor.u32 %s131, %s132
      %p134 = scmp.eq.s32.totalorder %s133, 0
      %s136 = sadd.s32 %s135, 1
      %s137 = scalar_select %p134, %s135, %s136
      %p140 = pneg %p134
      %p141 = scmp.eq.s32.totalorder %s13, 1
      %p142 = por %p140, %p141
      %p143 = scmp.ne.s32.totalorder %s135, %s138
      %p144 = scmp.eq.s32.totalorder %s13, 0
      %p145 = por %p143, %p144
      %p146 = scmp.ne.s32.totalorder %s135, %s138
      %p147 = scmp.eq.s32.totalorder %s18, 1
      %p148 = por %p146, %p147
      %p149 = scmp.ne.s32.totalorder %s138, %s139
      %p150 = scmp.eq.s32.totalorder %s18, 0
      %p151 = por %p149, %p150
      %p152 = scmp.ne.s32.totalorder %s138, %s139
      %p153 = scmp.eq.s32.totalorder %s19, 1
      %p154 = por %p152, %p153
      %p156 = scmp.ne.s32.totalorder %s139, %s155
      %p157 = scmp.eq.s32.totalorder %s19, 0
      %p158 = por %p156, %p157
      %p159 = scmp.le.s32.totalorder 1, %s13
      %p160 = scmp.lt.s32.totalorder %s13, 3
      %p161 = pnand %p159, %p160
      %p162 = pneg %p161
      // Predicated region
      $region9: #{tpu_custom_call.1} parent=5 // pred_check
        _
      $region10: #{tpu_custom_call.1} parent=5 // pred_check_branch
        %164 = sbr.rel (%p161) target = $region12
      $region11: #{tpu_custom_call.1} parent=5 // pred_region
        %s165 = ssub.s32 %s13, 1
        // Predicated region
        $region13: #{tpu_custom_call.1} parent=11 // pred_check
          %p166 = pneg %p102
        $region14: #{tpu_custom_call.1} parent=11 // pred_check_branch
          %168 = sbr.rel (%p166) target = $region16
        $region15: #{tpu_custom_call.1} parent=11 // pred_region
          _
        $region16: #{tpu_custom_call.1} parent=11 // pred_fallthru
          _
        // Predicated region
        $region17: #{tpu_custom_call.1} parent=11 // pred_check
          %p169 = pneg %p123
        $region18: #{tpu_custom_call.1} parent=11 // pred_check_branch
          %171 = sbr.rel (%p169) target = $region20
        $region19: #{tpu_custom_call.1} parent=11 // pred_region
          _
        $region20: #{tpu_custom_call.1} parent=11 // pred_fallthru
          _
      $region12: #{tpu_custom_call.1} parent=5 // pred_fallthru
        _
      %p172 = scmp.lt.s32.totalorder %s13, 2
      // Predicated region
      $region21: #{tpu_custom_call.1} parent=5 // pred_check
        %p173 = pneg %p172
      $region22: #{tpu_custom_call.1} parent=5 // pred_check_branch
        %175 = sbr.rel (%p173) target = $region24
      $region23: #{tpu_custom_call.1} parent=5 // pred_region
        // Predicated region
        $region25: #{tpu_custom_call.1} parent=23 // pred_check
          %p176 = pneg %p47
        $region26: #{tpu_custom_call.1} parent=23 // pred_check_branch
          %178 = sbr.rel (%p176) target = $region28
        $region27: #{tpu_custom_call.1} parent=23 // pred_region
          %p179 = scmp.lt.s32.totalorder %s20, 1
          %s180 = scalar_select %p179, %s20, 1
          %p181 = scmp.lt.s32.totalorder %s21, 0
          %s182 = scalar_select %p181, %s21, 0
          %s183 = sadd.s32 %s182, %s180
          %s184 = smul.addr %s183, 8
          %s185 = scalar_lea.vmem %s0, %s184
        $region28: #{tpu_custom_call.1} parent=23 // pred_fallthru
          _
        // Predicated region
        $region29: #{tpu_custom_call.1} parent=23 // pred_check
          %p186 = pneg %p75
        $region30: #{tpu_custom_call.1} parent=23 // pred_check_branch
          %188 = sbr.rel (%p186) target = $region32
        $region31: #{tpu_custom_call.1} parent=23 // pred_region
          %p189 = scmp.lt.s32.totalorder %s20, 1
          %s190 = scalar_select %p189, %s20, 1
          %p191 = scmp.lt.s32.totalorder %s21, 0
          %s192 = scalar_select %p191, %s21, 0
          %s193 = sadd.s32 %s192, %s190
          %s194 = smul.addr %s193, 8
          %s195 = scalar_lea.vmem %s1, %s194
        $region32: #{tpu_custom_call.1} parent=23 // pred_fallthru
          _
      $region24: #{tpu_custom_call.1} parent=5 // pred_fallthru
        _
      %p196 = scmp.le.s32.totalorder 1, %s13
      %p197 = scmp.lt.s32.totalorder %s13, 3
      %p198 = pnand %p196, %p197
      %p199 = pneg %p198
      // Predicated region
      $region33: #{tpu_custom_call.1} parent=5 // pred_check
        _
      $region34: #{tpu_custom_call.1} parent=5 // pred_check_branch
        %201 = sbr.rel (%p198) target = $region36
      $region35: #{tpu_custom_call.1} parent=5 // pred_region
        %s202 = ssub.s32 %s13, 1
        %p203 = scmp.lt.s32.totalorder %s22, 1
        %s204 = scalar_select %p203, %s22, 1
        %p205 = scmp.lt.s32.totalorder %s23, 0
        %s206 = scalar_select %p205, %s23, 0
        %s207 = sadd.s32 %s206, %s204
        %s208 = smul.addr %s207, 8
        %s209 = scalar_lea.vmem %s0, %s208
        %p210 = pneg %p53
        %p211 = pneg %p50
        %p212 = scmp.lt.s32.totalorder %s22, 1
        %s213 = scalar_select %p212, %s22, 1
        %p214 = scmp.lt.s32.totalorder %s23, 0
        %s215 = scalar_select %p214, %s23, 0
        %s216 = sadd.s32 %s215, %s213
        %s217 = smul.addr %s216, 8
        %s218 = scalar_lea.vmem %s1, %s217
        %p219 = pneg %p81
        %p220 = pneg %p78
        %p221 = pneg %p102
        %p222 = pneg %p99
        %p223 = pneg %p123
        %p224 = pneg %p120
        %p225 = pneg %p151
        %p226 = pneg %p148
        %s227 = sand.u32 %s138, 1
        %s228 = scalar_lea.sflag [#allocation3], %s227
        %s229 = sand.u32 %s138, 1
        %s230 = smul.addr %s229, 8
        %s231 = scalar_lea.vmem [#allocation2], %s230
        %p232 = scmp.lt.s32.totalorder %s22, 1
        %s233 = scalar_select %p232, %s22, 1
        %p234 = scmp.lt.s32.totalorder %s23, 0
        %s235 = scalar_select %p234, %s23, 0
        %s236 = sadd.s32 %s235, %s233
        %s237 = smul.addr %s236, 8
        %s238 = scalar_lea.vmem %s0, %s237
        %p239 = scmp.lt.s32.totalorder %s22, 1
        %s240 = scalar_select %p239, %s22, 1
        %p241 = scmp.lt.s32.totalorder %s23, 0
        %s242 = scalar_select %p241, %s23, 0
        %s243 = sadd.s32 %s242, %s240
        %s244 = smul.addr %s243, 8
        %s245 = scalar_lea.vmem %s1, %s244
        %v246 = vld [vmem:[%s238] sm:$0xff]
        %v247 = vld [vmem:[%s245] sm:$0xff]
        %v248 = vlaneseq
        %v249 = vand.u32 %v248, 127
        %250 = vset.pattern.permute.xlu0 0
        %251 = vperm.xlu0 %250, %v247
        %v252 = vpop.permute.xlu0 %251
        %vm253 = vcmp.eq.s32.totalorder %v252, %v249
        %v254 = vsel %vm253, 5.656854, 0.0
        %v255 = vld [vmem:[%s2] sm:$0x3f]
        %vm256 = vcmask 48128
        %v258 = vsel %vm256, %v254, 0
        %vm260 = vcmask 1045504
        %v262 = vsel %vm260, %v255, 0
        %264 = vmatprep.subr.mxu0 0.0
        %265 = vmatpush1.msra.mxu0 %v262
        %266 = vmatprep.subr.mxu0 0.0
        %267 = vmatpush1.msra.mxu0 0.0
        %268 = vmatprep.subr.mxu0 0.0
        %269 = vmatpush1.msra.mxu0 0.0
        %270 = vmatprep.subr.mxu0 0.0
        %271 = vmatpush1.msra.mxu0 0.0
        %272 = vmatprep.subr.mxu0 0.0
        %273 = vmatpush1.msra.mxu0 0.0
        %274 = vmatprep.subr.mxu0 0.0
        %275 = vmatpush1.msra.mxu0 0.0
        %276 = vmatprep.subr.mxu0 0.0
        %277 = vmatpush1.msra.mxu0 0.0
        %278 = vmatprep.subr.mxu0 0.0
        %279 = vmatpush1.msra.mxu0 0.0
        %280 = vmatprep.subr.mxu0 0.0
        %281 = vmatpush1.msra.mxu0 0.0
        %282 = vmatprep.subr.mxu0 0.0
        %283 = vmatpush1.msra.mxu0 0.0
        %284 = vmatprep.subr.mxu0 0.0
        %285 = vmatpush1.msra.mxu0 0.0
        %286 = vmatprep.subr.mxu0 0.0
        %287 = vmatpush1.msra.mxu0 0.0
        %288 = vmatprep.subr.mxu0 0.0
        %289 = vmatpush1.msra.mxu0 0.0
        %290 = vmatprep.subr.mxu0 0.0
        %291 = vmatpush1.msra.mxu0 0.0
        %292 = vmatprep.subr.mxu0 0.0
        %293 = vmatpush1.msra.mxu0 0.0
        %294 = vmatprep.subr.mxu0 0.0
        %295 = vmatpush1.msra.mxu0 0.0
        %296 = vmatprep.subr.mxu0 0.0
        %297 = vmatpush1.msra.mxu0 0.0
        %298 = vmatprep.subr.mxu0 0.0
        %299 = vmatpush1.msra.mxu0 0.0
        %300 = vmatprep.subr.mxu0 0.0
        %301 = vmatpush1.msra.mxu0 0.0
        %302 = vmatprep.subr.mxu0 0.0
        %303 = vmatpush1.msra.mxu0 0.0
        %304 = vmatprep.subr.mxu0 0.0
        %305 = vmatpush1.msra.mxu0 0.0
        %306 = vmatprep.subr.mxu0 0.0
        %307 = vmatpush1.msra.mxu0 0.0
        %308 = vmatprep.subr.mxu0 0.0
        %309 = vmatpush1.msra.mxu0 0.0
        %310 = vmatprep.subr.mxu0 0.0
        %311 = vmatpush1.msra.mxu0 0.0
        %312 = vmatprep.subr.mxu0 0.0
        %313 = vmatpush1.msra.mxu0 0.0
        %314 = vmatprep.subr.mxu0 0.0
        %315 = vmatpush1.msra.mxu0 0.0
        %316 = vmatprep.subr.mxu0 0.0
        %317 = vmatpush1.msra.mxu0 0.0
        %318 = vmatprep.subr.mxu0 0.0
        %319 = vmatpush1.msra.mxu0 0.0
        %320 = vmatprep.subr.mxu0 0.0
        %321 = vmatpush1.msra.mxu0 0.0
        %322 = vmatprep.subr.mxu0 0.0
        %323 = vmatpush1.msra.mxu0 0.0
        %324 = vmatprep.subr.mxu0 0.0
        %325 = vmatpush1.msra.mxu0 0.0
        %326 = vmatprep.subr.mxu0 0.0
        %327 = vmatpush1.msra.mxu0 0.0
        %328 = vmatprep.mubr.f32.mxu0 0.0
        %329 = vmatmul.mubr.f32.gmra.mrb[0].mxu0 %v258
        %v330 = vpop.f32.mrb[0].mxu0
        %v331 = vadd.f32 0.0, %v330
        %v332 = vpop.f32.mrb[0].mxu0
        %333 = vdwg.mxu0
        %334 = vst [vmem:[%s231] sm:$0xff] %v331
        %v335 = vld [vmem:[%s3] sm:$0x1]
        %v336 = vld [vmem:[%s3 + $0x1] sm:$0x1]
        %338 = vset.pattern.permute.xlu0 0
        %339 = vperm.xlu0 %338, %v246
        %v340 = vpop.permute.xlu0 %339
        %v342 = vlaneseq
        %v343 = vshrl.u32 %v342, 7
        %v344 = vsub.s32 0, %v343
        %v345 = vrot.slane %v335, %v344
        %v346 = vmul.f32 %v340, %v345
        %v347 = vlaneseq
        %v348 = vshrl.u32 %v347, 7
        %v349 = vsub.s32 0, %v348
        %v350 = vrot.slane %v336, %v349
        %v351 = vadd.f32 %v346, %v350
        %vm352 = vcmp.ne.f32.partialorder %v246, 0.0
        %v353 = vsel %vm352, 1, 0
        %v354 = vcvt.s32.f32 %v353
        %v355 = vld [vmem:[%s231] sm:$0xff]
        %v356 = vand.u32 2147483647, %v351
        %vm357 = vcmp.le.f32.partialorder %v356, 0.7853982
        %vm358 = vcmp.lt.s32.totalorder %v351, 0
        %v359 = vand.u32 %v351, 2139095040
        %v360 = vshrl.u32 %v359, 23
        %v361 = vsub.s32 %v360, 127
        %v362 = vand.u32 2147483647, %v351
        %v363 = vand.u32 %v362, 8388607
        %v364 = vor.u32 %v363, 8388608
        %v365 = vsub.s32 0, %v364
        %v366 = vadd.s32 %v361, 1
        %vm367 = vcmp.gt.s32.totalorder %v366, 0
        %v368 = vsel %vm367, %v366, 0
        %v369 = vshrl.u32 %v368, 5
        %v370 = vand.u32 %v368, 31
        %v371 = vsub.s32 32, %v370
        %v372 = vshrl.u32 683565275, %v371
        %v373 = vshll.u32 683565275, %v370
        %v374 = vshrl.u32 2475754826, %v371
        %v375 = vor.u32 %v373, %v374
        %v376 = vshll.u32 2475754826, %v370
        %v377 = vshrl.u32 2131351028, %v371
        %v378 = vor.u32 %v376, %v377
        %v379 = vshll.u32 2131351028, %v370
        %v380 = vshrl.u32 2102212464, %v371
        %v381 = vor.u32 %v379, %v380
        %v382 = vshll.u32 2102212464, %v370
        %v383 = vshrl.u32 920167782, %v371
        %v384 = vor.u32 %v382, %v383
        %v385 = vshll.u32 920167782, %v370
        %v386 = vshrl.u32 1326507024, %v371
        %v387 = vor.u32 %v385, %v386
        %vm388 = vcmp.lt.s32.totalorder %v369, 1
        %vm389 = vcmp.lt.s32.totalorder %v369, 2
        %vm390 = vcmp.lt.s32.totalorder %v369, 3
        %vm391 = vcmp.lt.s32.totalorder %v369, 4
        %v392 = vsel %vm388, %v372, %v375
        %v393 = vsel %vm391, %v381, 2102212464
        %v394 = vsel %vm390, %v378, %v393
        %v395 = vsel %vm389, %v392, %v394
        %v396 = vsel %vm388, %v375, %v378
        %v397 = vsel %vm391, %v384, 920167782
        %v398 = vsel %vm390, %v381, %v397
        %v399 = vsel %vm389, %v396, %v398
        %v400 = vsel %vm388, %v378, %v381
        %v401 = vsel %vm391, %v387, 1326507024
        %v402 = vsel %vm390, %v384, %v401
        %v403 = vsel %vm389, %v400, %v402
        %v404 = vshll.u32 %v364, 8
        %v405 = vmul.u32.u64.compose %v404, %v403
        %v406 = vextract.low.u32 %v405
        %v407 = vextract.high.u32 %v405
        %v408 = vmul.u32.u64.compose %v404, %v399
        %v409 = vextract.low.u32 %v408
        %v410 = vextract.high.u32 %v408
        %v411 = vmul.u32 %v404, %v395
        %v412 = vadd.s32 %v407, %v409
        %vm413 = vc.u32 %v407, %v409
        %v414 = vadd.s32 %v410, 1
        %v415 = vsel %vm413, %v414, %v410
        %v416 = vadd.s32 %v411, %v415
        %v417 = vadd.s32 %v416, 536870912
        %v418 = vshrl.u32 %v417, 30
        %v419 = vshll.u32 %v418, 30
        %v420 = vsub.s32 %v416, %v419
        %vm421 = vcmp.lt.s32.totalorder %v420, 0
        %v422 = vsub.s32 0, %v420
        %v423 = vsel %vm421, %v422, %v420
        %v424 = vclz %v423
        %v425 = vsub.s32 %v424, 2
        %vm426 = vcmp.gt.s32.totalorder 0, %v425
        %v427 = vsel %vm426, 0, %v425
        %v428 = vsub.s32 32, %v427
        %v429 = vshll.u32 %v420, %v427
        %v430 = vshrl.u32 %v412, %v428
        %v431 = vor.u32 %v429, %v430
        %v432 = vsub.s32 4294967266, %v427
        %v433 = vadd.s32 %v432, 127
        %v434 = vshll.u32 %v433, 23
        %v435 = vor.u32 4788187, %v434
        %v436 = vand.u32 2147483647, %v435
        %v438 = vcvt.s32.f32 %v431
        %v439 = vmul.f32 %v438, %v436
        %v440 = vxor.u32 %v439, 2147483648
        %v441 = vsel %vm358, %v440, %v439
        %v442 = vsub.s32 4, %v418
        %v443 = vsel %vm358, %v442, %v418
        %v444 = vsel %vm357, %v351, %v441
        %v445 = vsel %vm357, 0, %v443
        %v446 = vcosq.f32.pop %v444
        %v447 = vsinq.f32.pop %v444
        %vm448 = vweird.f32 %v351
        %v449 = vadd.s32 %v445, 3
        %v450 = vand.u32 %v449, 3
        %vm451 = vcmp.lt.s32.totalorder %v450, 2
        %vm452 = vcmp.eq.s32.totalorder %v450, 0
        %v453 = vxor.u32 %v447, 2147483648
        %v454 = vsel %vm452, %v446, %v453
        %vm455 = vcmp.eq.s32.totalorder %v450, 2
        %v456 = vxor.u32 %v446, 2147483648
        %v457 = vsel %vm455, %v456, %v447
        %v458 = vsel %vm451, %v454, %v457
        %v459 = vsel %vm448, nan, %v458
        %461 = vset.pattern.permute.xlu0 0
        %462 = vperm.xlu0 %461, %v354
        %v463 = vpop.permute.xlu0 %462
        %v465 = vmul.f32 %v459, %v463
        %v466 = vadd.f32 %v355, %v465
        %467 = vst [vmem:[%s231] sm:$0xff] %v466
        %s468 = sand.u32 %s138, 1
        %s469 = scalar_lea.sflag [#allocation3], %s468
        %s470 = sand.u32 %s138, 1
        %s471 = smul.addr %s470, 8
        %s472 = scalar_lea.vmem [#allocation2], %s471
        // Predicated region
        $region37: #{tpu_custom_call.1} parent=35 // pred_check
          %p473 = pneg %p148
        $region38: #{tpu_custom_call.1} parent=35 // pred_check_branch
          %475 = sbr.rel (%p473) target = $region40
        $region39: #{tpu_custom_call.1} parent=35 // pred_region
          %s477 = ssub.s32 128, 128
          %478 = vsyncadd %s469, %s477
          %s479 = sadd.s32 %s23, %s22
          %s480 = smul.addr %s479, 128
          %s481 = scalar_lea.hbm %s4, %s480
          %s483 = sshll.u32 %s472, 4
          %s484 = int_to_ptr.vmem [resolvable:$true] %s483
          %486 = dma.vmem_to_hbm [thread:$0]  %s484, 128, %s481, %s469
        $region40: #{tpu_custom_call.1} parent=35 // pred_fallthru
          _
      $region36: #{tpu_custom_call.1} parent=5 // pred_fallthru
        _
      %p487 = scmp.le.s32.totalorder 2, %s13
      // Predicated region
      $region41: #{tpu_custom_call.1} parent=5 // pred_check
        %p488 = pneg %p487
      $region42: #{tpu_custom_call.1} parent=5 // pred_check_branch
        %490 = sbr.rel (%p488) target = $region44
      $region43: #{tpu_custom_call.1} parent=5 // pred_region
        %s491 = ssub.s32 %s13, 2
        // Predicated region
        $region45: #{tpu_custom_call.1} parent=43 // pred_check
          %p492 = pneg %p154
        $region46: #{tpu_custom_call.1} parent=43 // pred_check_branch
          %494 = sbr.rel (%p492) target = $region48
        $region47: #{tpu_custom_call.1} parent=43 // pred_region
          %s495 = sand.u32 %s139, 1
          %s496 = scalar_lea.sflag [#allocation3], %s495
          %s497 = sand.u32 %s139, 1
          %s498 = smul.addr %s497, 8
          %s499 = scalar_lea.vmem [#allocation2], %s498
          %500 = dma.done %s496, 128
        $region48: #{tpu_custom_call.1} parent=43 // pred_fallthru
          _
      $region44: #{tpu_custom_call.1} parent=5 // pred_fallthru
        _
    $region6: #{tpu_custom_call.1} parent=1 // loop_footer
      %s17 = sadd.s32 1, %s13
    $region7: #{tpu_custom_call.1} parent=1 // loop_footer_branch
      %12 = sbr.rel target = $region3
    $region8: #{tpu_custom_call.1} parent=1 // loop_exit
      _
    %501 = vsyncpa [#allocation3], 1
    %s502 = scalar_lea.sflag [#allocation3], 1
    %503 = vsyncpa %s502, 1

</llo_original>
